<compile_context>
chip_gen: v6e
topology: v6e:2x2x1
jax: 0.10.0
libtpu: 0.0.40
codegen_flags: <defaults>
</compile_context>

<pallas_src>
import functools

import jax
import jax.numpy as jnp
from jax import lax
from jax.experimental import pallas as pl
from jax.experimental.pallas import tpu as pltpu


def _inv_res_kernel(x_ref, w1_ref, b1_ref, dw_ref, bdw_ref, w2_ref, b2_ref,
                    o_ref, ypad_ref, *, H, W, pad, stride, use_res):
    HW = H * W
    Hd = w1_ref.shape[0]

    x = x_ref[0]                                   # (Cin, H*W), lane-dense

    # ---- expand: 1x1 conv (+ folded BN) + ReLU6   --  (Hd,Cin) @ (Cin,HW)
    y = jnp.dot(w1_ref[...], x, preferred_element_type=jnp.float32)
    y = jnp.clip(y + b1_ref[...], 0.0, 6.0)        # (Hd, HW)

    # ---- depthwise 3x3, padding=1, groups=Hd (+ folded BN) + ReLU6
    # Zero-bordered flat slab: [pad zeros | y (row-major H*W) | pad zeros].
    # The tap at spatial offset (ky-1, kx-1) of the stride-1 result is the
    # lane window starting at  pad + (ky-1)*W + (kx-1).  The zero borders
    # implement the row padding; an iota lane-mask implements the column
    # padding.  Only the 128-lane borders are re-zeroed each step (cheap,
    # tile-aligned, and safe when the batch axis is split across cores).
    zero_border = jnp.zeros((Hd, pad), jnp.float32)
    ypad_ref[:, :pad] = zero_border
    ypad_ref[:, pad + HW:] = zero_border
    ypad_ref[:, pad:pad + HW] = y                  # tile-aligned, unmasked

    col = lax.broadcasted_iota(jnp.int32, (1, HW), 1) % W
    col_ok = (col >= 1, None, col <= W - 2)        # masks for kx = 0, 1, 2

    dwv = dw_ref[...]                              # (Hd, 9) hoisted load

    # Centre tap (ky=1,kx=1): no shift, no mask -> seed the accumulator.
    acc = y * dwv[:, 4:5]
    for ky in range(3):
        for kx in range(3):
            if ky == 1 and kx == 1:
                continue
            off = pad + (ky - 1) * W + (kx - 1)
            tap = ypad_ref[:, off:off + HW]        # (Hd, HW) lane window
            if col_ok[kx] is not None:
                tap = jnp.where(col_ok[kx], tap, 0.0)
            k = ky * 3 + kx
            acc = acc + tap * dwv[:, k:k + 1]      # per-channel MAC (VPU)
    z = jnp.clip(acc + bdw_ref[...], 0.0, 6.0)     # (Hd, HW)

    if stride > 1:
        Ho, Wo = H // stride, W // stride
        # TODO(synk): stride>1 computes the full stride-1 depthwise result and
        # then decimates; strided tap accumulation would skip the extra MACs.
        z = z.reshape(Hd, Ho, stride, Wo, stride)[:, :, 0, :, 0]
        z = z.reshape(Hd, Ho * Wo)

    # ---- project: 1x1 conv (+ folded BN), no activation
    out = jnp.dot(w2_ref[...], z, preferred_element_type=jnp.float32)
    out = out + b2_ref[...]                        # (Cout, Ho*Wo)

    if use_res:
        out = out + x                              # stride==1 and Cin==Cout

    o_ref[0] = out.astype(o_ref.dtype)


def inverted_residual_block(x_nchw, folded, stride, use_res):
    """x_nchw: (N, Cin, H, W) float32.  folded: BN-folded params (fold_params)."""
    N, Cin, H, W = x_nchw.shape
    Hd = folded["w1"].shape[0]
    Cout = folded["w2"].shape[0]
    if stride > 1:
        assert H % stride == 0 and W % stride == 0, "stride must divide H, W"
        assert not use_res
    Ho, Wo = H // stride, W // stride
    HW, HWo = H * W, Ho * Wo
    pad = -(-(W + 1) // 128) * 128                 # lane-tile aligned border

    # NCHW -> (N, C, H*W): a free (contiguous) reshape, no transpose needed.
    x_flat = x_nchw.reshape(N, Cin, HW)

    kernel = functools.partial(_inv_res_kernel, H=H, W=W, pad=pad,
                               stride=stride, use_res=use_res)

    out_flat = pl.pallas_call(
        kernel,
        out_shape=jax.ShapeDtypeStruct((N, Cout, HWo), jnp.float32),
        grid_spec=pltpu.PrefetchScalarGridSpec(
            num_scalar_prefetch=0,
            grid=(N,),                             # one image per grid step
            in_specs=[
                pl.BlockSpec((1, Cin, HW), lambda n: (n, 0, 0)),
                pl.BlockSpec((Hd, Cin), lambda n: (0, 0)),
                pl.BlockSpec((Hd, 1), lambda n: (0, 0)),
                pl.BlockSpec((Hd, 9), lambda n: (0, 0)),
                pl.BlockSpec((Hd, 1), lambda n: (0, 0)),
                pl.BlockSpec((Cout, Hd), lambda n: (0, 0)),
                pl.BlockSpec((Cout, 1), lambda n: (0, 0)),
            ],
            out_specs=pl.BlockSpec((1, Cout, HWo), lambda n: (n, 0, 0)),
            scratch_shapes=[pltpu.VMEM((Hd, HW + 2 * pad), jnp.float32)],
        ),
        # Batch images are independent: "parallel" lets v7x's two TensorCores
        # split the grid (neutral on v5e/v6e).  Per-step VMEM here is a few
        # hundred KiB, far below the scoped defaults, so no explicit
        # vmem_limit_bytes is needed at these shapes.
        compiler_params=pltpu.CompilerParams(
            dimension_semantics=("parallel",)),
    )(x_flat, folded["w1"], folded["b1"], folded["dw"], folded["bdw"],
      folded["w2"], folded["b2"])

    return out_flat.reshape(N, Cout, Ho, Wo)       # free reshape back to NCHW


# ------------------------- parameter setup (deterministic) -------------------

def make_params(key, in_channels, out_channels, expand_ratio):
    hidden = in_channels * expand_ratio
    ks = jax.random.split(key, 12)
    p = {
        # conv weights, PyTorch layouts
        "w_exp": jax.random.normal(ks[0], (hidden, in_channels, 1, 1)) * 0.1,
        "w_dw": jax.random.normal(ks[1], (hidden, 1, 3, 3)) * 0.1,
        "w_prj": jax.random.normal(ks[2], (out_channels, hidden, 1, 1)) * 0.1,
        # BN params (inference / running stats)
        "g1": jax.random.normal(ks[3], (hidden,)) * 0.1 + 1.0,
        "be1": jax.random.normal(ks[4], (hidden,)) * 0.1,
        "m1": jax.random.normal(ks[5], (hidden,)) * 0.1,
        "v1": jnp.abs(jax.random.normal(ks[6], (hidden,))) * 0.1 + 1.0,
        "g2": jax.random.normal(ks[7], (hidden,)) * 0.1 + 1.0,
        "be2": jax.random.normal(ks[8], (hidden,)) * 0.1,
        "m2": jnp.zeros((hidden,)),
        "v2": jnp.ones((hidden,)),
        "g3": jax.random.normal(ks[9], (out_channels,)) * 0.1 + 1.0,
        "be3": jax.random.normal(ks[10], (out_channels,)) * 0.1,
        "m3": jax.random.normal(ks[11], (out_channels,)) * 0.1,
        "v3": jnp.ones((out_channels,)),
    }
    return jax.tree.map(lambda a: a.astype(jnp.float32), p)


def fold_params(p, eps=1e-5):
    """Fold inference BN into conv weights/biases, kernel-friendly layouts."""
    s1 = p["g1"] / jnp.sqrt(p["v1"] + eps)
    s2 = p["g2"] / jnp.sqrt(p["v2"] + eps)
    s3 = p["g3"] / jnp.sqrt(p["v3"] + eps)
    # expand: (hidden, Cin, 1, 1) -> (hidden, Cin), scaled per output channel
    w1 = p["w_exp"][:, :, 0, 0] * s1[:, None]
    b1 = (p["be1"] - p["m1"] * s1)[:, None]                 # (hidden, 1)
    # depthwise: (hidden, 1, 3, 3) -> (hidden, 9) with k = ky*3 + kx
    dw = (p["w_dw"][:, 0, :, :] * s2[:, None, None]).reshape(-1, 9)
    bdw = (p["be2"] - p["m2"] * s2)[:, None]                # (hidden, 1)
    # project: (Cout, hidden, 1, 1) -> (Cout, hidden)
    w2 = p["w_prj"][:, :, 0, 0] * s3[:, None]
    b2 = (p["be3"] - p["m3"] * s3)[:, None]                 # (Cout, 1)
    return {"w1": w1, "b1": b1, "dw": dw, "bdw": bdw, "w2": w2, "b2": b2}


# ------------------------- plain-JAX reference (NCHW, like PyTorch) ----------

def reference(x, p, stride, use_res, eps=1e-5):
    def bn(y, g, b, m, v):
        return ((y - m[None, :, None, None]) /
                jnp.sqrt(v[None, :, None, None] + eps) *
                g[None, :, None, None] + b[None, :, None, None])

    hidden = p["w_dw"].shape[0]
    dn = ("NCHW", "OIHW", "NCHW")
    y = lax.conv_general_dilated(x, p["w_exp"], (1, 1), "VALID",
                                 dimension_numbers=dn)
    y = jnp.clip(bn(y, p["g1"], p["be1"], p["m1"], p["v1"]), 0.0, 6.0)
    y = lax.conv_general_dilated(y, p["w_dw"], (stride, stride),
                                 ((1, 1), (1, 1)), dimension_numbers=dn,
                                 feature_group_count=hidden)
    y = jnp.clip(bn(y, p["g2"], p["be2"], p["m2"], p["v2"]), 0.0, 6.0)
    y = lax.conv_general_dilated(y, p["w_prj"], (1, 1), "VALID",
                                 dimension_numbers=dn)
    y = bn(y, p["g3"], p["be3"], p["m3"], p["v3"])
    if use_res:
        y = y + x
    return y


if __name__ == "__main__":
    # batch=2, in_channels=4, out_channels=4, spatial=16x16, stride=1,
    # expand_ratio=4 -> hidden_dim=16; residual connection active.
    N, Cin, H, W = 2, 4, 16, 16
    Cout, stride, expand_ratio = 4, 1, 4
    use_res = (stride == 1 and Cin == Cout)

    key = jax.random.PRNGKey(0)
    k_x, k_p = jax.random.split(key)
    x = jax.random.normal(k_x, (N, Cin, H, W), dtype=jnp.float32)

    raw = make_params(k_p, Cin, Cout, expand_ratio)
    folded = fold_params(raw)

    out = jax.block_until_ready(
        inverted_residual_block(x, folded, stride, use_res))
    ref = jax.block_until_ready(reference(x, raw, stride, use_res))

    assert out.shape == ref.shape, (out.shape, ref.shape)
    err = float(jnp.max(jnp.abs(out - ref)))
    assert jnp.allclose(out, ref, atol=2e-4, rtol=2e-4), err

    print("KERNEL_OK")
</pallas_src>

<mosaic_0001>
module attributes {stable_mosaic.version = 11 : i64} {
  func.func @_inv_res_kernel(%arg0: i32, %arg1: memref<1x4x256xf32, #tpu.memory_space<vmem>>, %arg2: memref<16x4xf32, #tpu.memory_space<vmem>>, %arg3: memref<16x1xf32, #tpu.memory_space<vmem>>, %arg4: memref<16x9xf32, #tpu.memory_space<vmem>>, %arg5: memref<16x1xf32, #tpu.memory_space<vmem>>, %arg6: memref<4x16xf32, #tpu.memory_space<vmem>>, %arg7: memref<4x1xf32, #tpu.memory_space<vmem>>, %arg8: memref<1x4x256xf32, #tpu.memory_space<vmem>>, %arg9: memref<16x512xf32, #tpu.memory_space<vmem>>) attributes {dimension_semantics = [#tpu.dimension_semantics<parallel>], iteration_bounds = array<i64: 2>, scalar_prefetch = 0 : i64, scratch_operands = 1 : i64, tpu.core_type = #tpu.core_type<tc>, window_params = [{transform_indices = @transform_0, window_bounds = array<i64: 1, 4, 256>}, {pipeline_mode = #tpu.pipeline_mode<synchronous>, transform_indices = @transform_1, window_bounds = array<i64: 16, 4>}, {pipeline_mode = #tpu.pipeline_mode<synchronous>, transform_indices = @transform_2, window_bounds = array<i64: 16, 1>}, {pipeline_mode = #tpu.pipeline_mode<synchronous>, transform_indices = @transform_3, window_bounds = array<i64: 16, 9>}, {pipeline_mode = #tpu.pipeline_mode<synchronous>, transform_indices = @transform_4, window_bounds = array<i64: 16, 1>}, {pipeline_mode = #tpu.pipeline_mode<synchronous>, transform_indices = @transform_5, window_bounds = array<i64: 4, 16>}, {pipeline_mode = #tpu.pipeline_mode<synchronous>, transform_indices = @transform_6, window_bounds = array<i64: 4, 1>}, {transform_indices = @transform_7, window_bounds = array<i64: 1, 4, 256>}]} {
    %c0 = arith.constant 0 : index
    %c0_0 = arith.constant 0 : index
    %c0_1 = arith.constant 0 : index
    %0 = vector.load %arg1[%c0, %c0_0, %c0_1] : memref<1x4x256xf32, #tpu.memory_space<vmem>>, vector<1x4x256xf32>
    %1 = vector.shape_cast %0 : vector<1x4x256xf32> to vector<4x256xf32>
    %c0_2 = arith.constant 0 : index
    %c0_3 = arith.constant 0 : index
    %2 = vector.load %arg2[%c0_2, %c0_3] : memref<16x4xf32, #tpu.memory_space<vmem>>, vector<16x4xf32>
    %cst = arith.constant dense<0.000000e+00> : vector<16x256xf32>
    %3 = tpu.matmul %2, %1, %cst {dimension_numbers = #tpu.dot_dimension_numbers<[1], [0], [0], [1], [0, 0, 1, 1], [], []>} : vector<16x4xf32>, vector<4x256xf32>, vector<16x256xf32> -> vector<16x256xf32>
    %c0_4 = arith.constant 0 : index
    %c0_5 = arith.constant 0 : index
    %4 = vector.load %arg3[%c0_4, %c0_5] : memref<16x1xf32, #tpu.memory_space<vmem>>, vector<16x1xf32>
    %5 = vector.broadcast %4 : vector<16x1xf32> to vector<16x256xf32>
    %6 = arith.addf %3, %5 : vector<16x256xf32>
    %cst_6 = arith.constant 0.000000e+00 : f32
    %cst_7 = arith.constant 6.000000e+00 : f32
    %7 = vector.broadcast %cst_6 : f32 to vector<16x256xf32>
    %8 = arith.maximumf %7, %6 : vector<16x256xf32>
    %9 = vector.broadcast %cst_7 : f32 to vector<16x256xf32>
    %10 = arith.minimumf %9, %8 : vector<16x256xf32>
    %cst_8 = arith.constant 0.000000e+00 : f32
    %11 = vector.broadcast %cst_8 : f32 to vector<16x128xf32>
    %c0_9 = arith.constant 0 : index
    %c0_10 = arith.constant 0 : index
    %12 = vector.load %arg9[%c0_9, %c0_10] : memref<16x512xf32, #tpu.memory_space<vmem>>, vector<16x128xf32>
    tpu.vector_store %arg9[%c0_9, %c0_10], %11 {strides = array<i32>} : memref<16x512xf32, #tpu.memory_space<vmem>>, vector<16x128xf32>,
    %c0_11 = arith.constant 0 : index
    %c384 = arith.constant 384 : index
    %13 = vector.load %arg9[%c0_11, %c384] : memref<16x512xf32, #tpu.memory_space<vmem>>, vector<16x128xf32>
    tpu.vector_store %arg9[%c0_11, %c384], %11 {strides = array<i32>} : memref<16x512xf32, #tpu.memory_space<vmem>>, vector<16x128xf32>,
    %c0_12 = arith.constant 0 : index
    %c128 = arith.constant 128 : index
    %14 = vector.load %arg9[%c0_12, %c128] : memref<16x512xf32, #tpu.memory_space<vmem>>, vector<16x256xf32>
    tpu.vector_store %arg9[%c0_12, %c128], %10 {strides = array<i32>} : memref<16x512xf32, #tpu.memory_space<vmem>>, vector<16x256xf32>,
    %15 = tpu.iota {dimensions = array<i32: 1>} : vector<1x256xi32>
    %c16_i32 = arith.constant 16 : i32
    %c0_i32 = arith.constant 0 : i32
    %16 = arith.cmpi eq, %c16_i32, %c0_i32 : i32
    %c1_i32 = arith.constant 1 : i32
    %17 = arith.select %16, %c1_i32, %c16_i32 : i32
    %18 = vector.broadcast %17 : i32 to vector<1x256xi32>
    %19 = arith.remsi %15, %18 : vector<1x256xi32>
    %c0_i32_13 = arith.constant 0 : i32
    %20 = vector.broadcast %c0_i32_13 : i32 to vector<1x256xi32>
    %21 = arith.cmpi ne, %19, %20 : vector<1x256xi32>
    %c0_i32_14 = arith.constant 0 : i32
    %22 = vector.broadcast %c0_i32_14 : i32 to vector<1x256xi32>
    %23 = arith.cmpi slt, %19, %22 : vector<1x256xi32>
    %c0_i32_15 = arith.constant 0 : i32
    %24 = arith.cmpi slt, %17, %c0_i32_15 : i32
    %25 = vector.broadcast %24 : i1 to vector<1x256xi1>
    %26 = vector.broadcast %25 : vector<1x256xi1> to vector<1x256xi1>
    %27 = arith.xori %23, %26 : vector<1x256xi1>
    %28 = arith.andi %27, %21 : vector<1x256xi1>
    %29 = vector.broadcast %17 : i32 to vector<1x256xi32>
    %30 = arith.addi %19, %29 : vector<1x256xi32>
    %31 = arith.select %28, %30, %19 : vector<1x256xi1>, vector<1x256xi32>
    %c1_i32_16 = arith.constant 1 : i32
    %32 = vector.broadcast %c1_i32_16 : i32 to vector<1x256xi32>
    %33 = arith.cmpi sge, %31, %32 : vector<1x256xi32>
    %c14_i32 = arith.constant 14 : i32
    %34 = vector.broadcast %c14_i32 : i32 to vector<1x256xi32>
    %35 = arith.cmpi sle, %31, %34 : vector<1x256xi32>
    %c0_17 = arith.constant 0 : index
    %c0_18 = arith.constant 0 : index
    %36 = vector.load %arg4[%c0_17, %c0_18] : memref<16x9xf32, #tpu.memory_space<vmem>>, vector<16x9xf32>
    %37 = vector.extract_strided_slice %36 {offsets = [0, 4], sizes = [16, 1], strides = [1, 1]} : vector<16x9xf32> to vector<16x1xf32>
    %38 = vector.broadcast %37 : vector<16x1xf32> to vector<16x256xf32>
    %39 = arith.mulf %10, %38 : vector<16x256xf32>
    %c0_19 = arith.constant 0 : index
    %c111 = arith.constant 111 : index
    %40 = vector.load %arg9[%c0_19, %c111] : memref<16x512xf32, #tpu.memory_space<vmem>>, vector<16x256xf32>
    %cst_20 = arith.constant 0.000000e+00 : f32
    %41 = vector.shape_cast %33 : vector<1x256xi1> to vector<1x256xi1>
    %42 = vector.broadcast %41 : vector<1x256xi1> to vector<16x256xi1>
    %43 = vector.broadcast %cst_20 : f32 to vector<16x256xf32>
    %44 = arith.select %42, %40, %43 : vector<16x256xi1>, vector<16x256xf32>
    %45 = vector.extract_strided_slice %36 {offsets = [0, 0], sizes = [16, 1], strides = [1, 1]} : vector<16x9xf32> to vector<16x1xf32>
    %46 = vector.broadcast %45 : vector<16x1xf32> to vector<16x256xf32>
    %47 = arith.mulf %44, %46 : vector<16x256xf32>
    %48 = arith.addf %39, %47 : vector<16x256xf32>
    %c0_21 = arith.constant 0 : index
    %c112 = arith.constant 112 : index
    %49 = vector.load %arg9[%c0_21, %c112] : memref<16x512xf32, #tpu.memory_space<vmem>>, vector<16x256xf32>
    %50 = vector.extract_strided_slice %36 {offsets = [0, 1], sizes = [16, 1], strides = [1, 1]} : vector<16x9xf32> to vector<16x1xf32>
    %51 = vector.broadcast %50 : vector<16x1xf32> to vector<16x256xf32>
    %52 = arith.mulf %49, %51 : vector<16x256xf32>
    %53 = arith.addf %48, %52 : vector<16x256xf32>
    %c0_22 = arith.constant 0 : index
    %c113 = arith.constant 113 : index
    %54 = vector.load %arg9[%c0_22, %c113] : memref<16x512xf32, #tpu.memory_space<vmem>>, vector<16x256xf32>
    %cst_23 = arith.constant 0.000000e+00 : f32
    %55 = vector.shape_cast %35 : vector<1x256xi1> to vector<1x256xi1>
    %56 = vector.broadcast %55 : vector<1x256xi1> to vector<16x256xi1>
    %57 = vector.broadcast %cst_23 : f32 to vector<16x256xf32>
    %58 = arith.select %56, %54, %57 : vector<16x256xi1>, vector<16x256xf32>
    %59 = vector.extract_strided_slice %36 {offsets = [0, 2], sizes = [16, 1], strides = [1, 1]} : vector<16x9xf32> to vector<16x1xf32>
    %60 = vector.broadcast %59 : vector<16x1xf32> to vector<16x256xf32>
    %61 = arith.mulf %58, %60 : vector<16x256xf32>
    %62 = arith.addf %53, %61 : vector<16x256xf32>
    %c0_24 = arith.constant 0 : index
    %c127 = arith.constant 127 : index
    %63 = vector.load %arg9[%c0_24, %c127] : memref<16x512xf32, #tpu.memory_space<vmem>>, vector<16x256xf32>
    %cst_25 = arith.constant 0.000000e+00 : f32
    %64 = vector.shape_cast %33 : vector<1x256xi1> to vector<1x256xi1>
    %65 = vector.broadcast %64 : vector<1x256xi1> to vector<16x256xi1>
    %66 = vector.broadcast %cst_25 : f32 to vector<16x256xf32>
    %67 = arith.select %65, %63, %66 : vector<16x256xi1>, vector<16x256xf32>
    %68 = vector.extract_strided_slice %36 {offsets = [0, 3], sizes = [16, 1], strides = [1, 1]} : vector<16x9xf32> to vector<16x1xf32>
    %69 = vector.broadcast %68 : vector<16x1xf32> to vector<16x256xf32>
    %70 = arith.mulf %67, %69 : vector<16x256xf32>
    %71 = arith.addf %62, %70 : vector<16x256xf32>
    %c0_26 = arith.constant 0 : index
    %c129 = arith.constant 129 : index
    %72 = vector.load %arg9[%c0_26, %c129] : memref<16x512xf32, #tpu.memory_space<vmem>>, vector<16x256xf32>
    %cst_27 = arith.constant 0.000000e+00 : f32
    %73 = vector.shape_cast %35 : vector<1x256xi1> to vector<1x256xi1>
    %74 = vector.broadcast %73 : vector<1x256xi1> to vector<16x256xi1>
    %75 = vector.broadcast %cst_27 : f32 to vector<16x256xf32>
    %76 = arith.select %74, %72, %75 : vector<16x256xi1>, vector<16x256xf32>
    %77 = vector.extract_strided_slice %36 {offsets = [0, 5], sizes = [16, 1], strides = [1, 1]} : vector<16x9xf32> to vector<16x1xf32>
    %78 = vector.broadcast %77 : vector<16x1xf32> to vector<16x256xf32>
    %79 = arith.mulf %76, %78 : vector<16x256xf32>
    %80 = arith.addf %71, %79 : vector<16x256xf32>
    %c0_28 = arith.constant 0 : index
    %c143 = arith.constant 143 : index
    %81 = vector.load %arg9[%c0_28, %c143] : memref<16x512xf32, #tpu.memory_space<vmem>>, vector<16x256xf32>
    %cst_29 = arith.constant 0.000000e+00 : f32
    %82 = vector.shape_cast %33 : vector<1x256xi1> to vector<1x256xi1>
    %83 = vector.broadcast %82 : vector<1x256xi1> to vector<16x256xi1>
    %84 = vector.broadcast %cst_29 : f32 to vector<16x256xf32>
    %85 = arith.select %83, %81, %84 : vector<16x256xi1>, vector<16x256xf32>
    %86 = vector.extract_strided_slice %36 {offsets = [0, 6], sizes = [16, 1], strides = [1, 1]} : vector<16x9xf32> to vector<16x1xf32>
    %87 = vector.broadcast %86 : vector<16x1xf32> to vector<16x256xf32>
    %88 = arith.mulf %85, %87 : vector<16x256xf32>
    %89 = arith.addf %80, %88 : vector<16x256xf32>
    %c0_30 = arith.constant 0 : index
    %c144 = arith.constant 144 : index
    %90 = vector.load %arg9[%c0_30, %c144] : memref<16x512xf32, #tpu.memory_space<vmem>>, vector<16x256xf32>
    %91 = vector.extract_strided_slice %36 {offsets = [0, 7], sizes = [16, 1], strides = [1, 1]} : vector<16x9xf32> to vector<16x1xf32>
    %92 = vector.broadcast %91 : vector<16x1xf32> to vector<16x256xf32>
    %93 = arith.mulf %90, %92 : vector<16x256xf32>
    %94 = arith.addf %89, %93 : vector<16x256xf32>
    %c0_31 = arith.constant 0 : index
    %c145 = arith.constant 145 : index
    %95 = vector.load %arg9[%c0_31, %c145] : memref<16x512xf32, #tpu.memory_space<vmem>>, vector<16x256xf32>
    %cst_32 = arith.constant 0.000000e+00 : f32
    %96 = vector.shape_cast %35 : vector<1x256xi1> to vector<1x256xi1>
    %97 = vector.broadcast %96 : vector<1x256xi1> to vector<16x256xi1>
    %98 = vector.broadcast %cst_32 : f32 to vector<16x256xf32>
    %99 = arith.select %97, %95, %98 : vector<16x256xi1>, vector<16x256xf32>
    %100 = vector.extract_strided_slice %36 {offsets = [0, 8], sizes = [16, 1], strides = [1, 1]} : vector<16x9xf32> to vector<16x1xf32>
    %101 = vector.broadcast %100 : vector<16x1xf32> to vector<16x256xf32>
    %102 = arith.mulf %99, %101 : vector<16x256xf32>
    %103 = arith.addf %94, %102 : vector<16x256xf32>
    %c0_33 = arith.constant 0 : index
    %c0_34 = arith.constant 0 : index
    %104 = vector.load %arg5[%c0_33, %c0_34] : memref<16x1xf32, #tpu.memory_space<vmem>>, vector<16x1xf32>
    %105 = vector.broadcast %104 : vector<16x1xf32> to vector<16x256xf32>
    %106 = arith.addf %103, %105 : vector<16x256xf32>
    %cst_35 = arith.constant 0.000000e+00 : f32
    %cst_36 = arith.constant 6.000000e+00 : f32
    %107 = vector.broadcast %cst_35 : f32 to vector<16x256xf32>
    %108 = arith.maximumf %107, %106 : vector<16x256xf32>
    %109 = vector.broadcast %cst_36 : f32 to vector<16x256xf32>
    %110 = arith.minimumf %109, %108 : vector<16x256xf32>
    %c0_37 = arith.constant 0 : index
    %c0_38 = arith.constant 0 : index
    %111 = vector.load %arg6[%c0_37, %c0_38] : memref<4x16xf32, #tpu.memory_space<vmem>>, vector<4x16xf32>
    %cst_39 = arith.constant dense<0.000000e+00> : vector<4x256xf32>
    %112 = tpu.matmul %111, %110, %cst_39 {dimension_numbers = #tpu.dot_dimension_numbers<[1], [0], [0], [1], [0, 0, 1, 1], [], []>} : vector<4x16xf32>, vector<16x256xf32>, vector<4x256xf32> -> vector<4x256xf32>
    %c0_40 = arith.constant 0 : index
    %c0_41 = arith.constant 0 : index
    %113 = vector.load %arg7[%c0_40, %c0_41] : memref<4x1xf32, #tpu.memory_space<vmem>>, vector<4x1xf32>
    %114 = vector.broadcast %113 : vector<4x1xf32> to vector<4x256xf32>
    %115 = arith.addf %112, %114 : vector<4x256xf32>
    %116 = arith.addf %115, %1 : vector<4x256xf32>
    %c0_42 = arith.constant 0 : index
    %c0_43 = arith.constant 0 : index
    %c0_44 = arith.constant 0 : index
    %117 = vector.load %arg8[%c0_42, %c0_43, %c0_44] : memref<1x4x256xf32, #tpu.memory_space<vmem>>, vector<1x4x256xf32>
    %118 = vector.shape_cast %117 : vector<1x4x256xf32> to vector<4x256xf32>
    %119 = vector.shape_cast %116 : vector<4x256xf32> to vector<1x4x256xf32>
    tpu.vector_store %arg8[%c0_42, %c0_43, %c0_44], %119 {strides = array<i32>} : memref<1x4x256xf32, #tpu.memory_space<vmem>>, vector<1x4x256xf32>,
    return
  }
  func.func @transform_0(%arg0: i32) -> (i32, i32, i32) {
    %c0_i32 = arith.constant 0 : i32
    %c0_i32_0 = arith.constant 0 : i32
    %c0_i32_1 = arith.constant 0 : i32
    return %arg0, %c0_i32, %c0_i32_0 : i32, i32, i32
  }
  func.func @transform_1(%arg0: i32) -> (i32, i32) {
    %c0_i32 = arith.constant 0 : i32
    %c0_i32_0 = arith.constant 0 : i32
    %c0_i32_1 = arith.constant 0 : i32
    return %c0_i32, %c0_i32_0 : i32, i32
  }
  func.func @transform_2(%arg0: i32) -> (i32, i32) {
    %c0_i32 = arith.constant 0 : i32
    %c0_i32_0 = arith.constant 0 : i32
    %c0_i32_1 = arith.constant 0 : i32
    return %c0_i32, %c0_i32_0 : i32, i32
  }
  func.func @transform_3(%arg0: i32) -> (i32, i32) {
    %c0_i32 = arith.constant 0 : i32
    %c0_i32_0 = arith.constant 0 : i32
    %c0_i32_1 = arith.constant 0 : i32
    return %c0_i32, %c0_i32_0 : i32, i32
  }
  func.func @transform_4(%arg0: i32) -> (i32, i32) {
    %c0_i32 = arith.constant 0 : i32
    %c0_i32_0 = arith.constant 0 : i32
    %c0_i32_1 = arith.constant 0 : i32
    return %c0_i32, %c0_i32_0 : i32, i32
  }
  func.func @transform_5(%arg0: i32) -> (i32, i32) {
    %c0_i32 = arith.constant 0 : i32
    %c0_i32_0 = arith.constant 0 : i32
    %c0_i32_1 = arith.constant 0 : i32
    return %c0_i32, %c0_i32_0 : i32, i32
  }
  func.func @transform_6(%arg0: i32) -> (i32, i32) {
    %c0_i32 = arith.constant 0 : i32
    %c0_i32_0 = arith.constant 0 : i32
    %c0_i32_1 = arith.constant 0 : i32
    return %c0_i32, %c0_i32_0 : i32, i32
  }
  func.func @transform_7(%arg0: i32) -> (i32, i32, i32) {
    %c0_i32 = arith.constant 0 : i32
    %c0_i32_0 = arith.constant 0 : i32
    %c0_i32_1 = arith.constant 0 : i32
    return %arg0, %c0_i32, %c0_i32_0 : i32, i32, i32
  }
}

</mosaic_0001>

<llo_original>
// kernel: tpu_custom_call.1
$region0: #{tpu_custom_call.1}
  #allocation0 [shape = 'u32[]', space=smem, size = 0x4, offset = 0x4, fixed_abs, tag = 'smem constant byte address 0x4 - core index']
  #allocation1 [shape = 'u32[144,128]{1,0:T(1,128)}', space=vmem, size = 0x12000, scoped, tag = 'internal scratch']
  #allocation2 [shape = 'f32[16,512]{1,0:T(8,128)}', space=vmem, size = 0x8000, scoped, tag = 'scratch operand']
  %s0 = inlined_call_operand.vmem [shape: f32[2,4,256], index: 0, kind: input, shape index: {}]
  %s1 = inlined_call_operand.vmem [shape: f32[16,4], index: 1, kind: input, shape index: {}]
  %s2 = inlined_call_operand.vmem [shape: f32[16,1], index: 2, kind: input, shape index: {}]
  %s3 = inlined_call_operand.vmem [shape: f32[16,9], index: 3, kind: input, shape index: {}]
  %s4 = inlined_call_operand.vmem [shape: f32[16,1], index: 4, kind: input, shape index: {}]
  %s5 = inlined_call_operand.vmem [shape: f32[4,16], index: 5, kind: input, shape index: {}]
  %s6 = inlined_call_operand.vmem [shape: f32[4,1], index: 6, kind: input, shape index: {}]
  %s7 = inlined_call_operand.hbm [shape: f32[2,4,256], index: 7, kind: output, shape index: {}]
  %s8 = sld [smem:[#allocation0]]
  $region61: #{tpu_custom_call.1} parent=0
    _
  %s10 = ssub.s32 1, %s8
  %s11 = scalar_select 0, %s10, %s8
  $region1: #{tpu_custom_call.1} parent=0
    #allocation3 [shape = 'u8[8192]{0}', space=vmem, size = 0x2000, scoped, tag = 'output window, operand 0']
    #allocation4 [shape = 's32[2]{0}', space=sflag, size = 0x8, scoped, tag = 'scoped memory for tpu_custom_call.1']
    %12 = vsyncpa [#allocation4], 0
    %s13 = scalar_lea.sflag [#allocation4], 1
    %14 = vsyncpa %s13, 0
    loop: start=0, step=1, limit=4
    $region2: #{tpu_custom_call.1} parent=1 // loop_pre_header
      _
    $region3: #{tpu_custom_call.1} parent=1 // loop_header
      %s16 = sphi 0, %s20
      %p17 = scmp.ge.s32.totalorder %s16, 4
      %s26 = sphi 0, %s28
      %s29 = sphi 0, %s26
      %s30 = sphi 0, %s29
      %s46 = sphi 0, %s30
      %s50 = sphi 0, %s50
      %s52 = sphi 0, %s50
      %s53 = sphi 0, %s52
      %s67 = sphi 0, %s53
      %s71 = sphi 0, %s71
      %s73 = sphi 0, %s71
      %s74 = sphi 0, %s73
      %s88 = sphi 0, %s74
      %s92 = sphi 0, %s92
      %s94 = sphi 0, %s92
      %s95 = sphi 0, %s94
      %s109 = sphi 0, %s95
      %s113 = sphi 0, %s113
      %s115 = sphi 0, %s113
      %s116 = sphi 0, %s115
      %s130 = sphi 0, %s116
      %s134 = sphi 0, %s134
      %s136 = sphi 0, %s134
      %s137 = sphi 0, %s136
      %s151 = sphi 0, %s137
      %s155 = sphi 0, %s155
      %s157 = sphi 0, %s155
      %s158 = sphi 0, %s157
      %s172 = sphi 0, %s158
      %s178 = sphi 0, %s180
      %s181 = sphi 0, %s178
      %s182 = sphi 0, %s181
      %s198 = sphi 0, %s182
    $region4: #{tpu_custom_call.1} parent=1 // loop_header_branch
      %19 = sbr.rel (%p17) target = $region8
    $region5: #{tpu_custom_call.1} parent=1 // loop_body
      %s21 = ssub.s32 %s16, 1
      %s22 = ssub.s32 %s16, 2
      %s23 = sadd.s32 %s16, 1
      %s24 = ssub.s32 %s16, %s23
      %p25 = scmp.eq.s32.totalorder %s24, 0
      %s27 = sadd.s32 %s26, 1
      %s28 = scalar_select %p25, %s26, %s27
      %p31 = pneg %p25
      %p32 = scmp.eq.s32.totalorder %s16, 1
      %p33 = por %p31, %p32
      %p34 = scmp.ne.s32.totalorder %s26, %s29
      %p35 = scmp.eq.s32.totalorder %s16, 0
      %p36 = por %p34, %p35
      %p37 = scmp.ne.s32.totalorder %s26, %s29
      %p38 = scmp.eq.s32.totalorder %s21, 1
      %p39 = por %p37, %p38
      %p40 = scmp.ne.s32.totalorder %s29, %s30
      %p41 = scmp.eq.s32.totalorder %s21, 0
      %p42 = por %p40, %p41
      %p43 = scmp.ne.s32.totalorder %s29, %s30
      %p44 = scmp.eq.s32.totalorder %s22, 1
      %p45 = por %p43, %p44
      %p47 = scmp.ne.s32.totalorder %s30, %s46
      %p48 = scmp.eq.s32.totalorder %s22, 0
      %p49 = por %p47, %p48
      %s51 = sadd.s32 %s50, 1
      %p54 = scmp.eq.s32.totalorder %s16, 1
      %p55 = scmp.ne.s32.totalorder %s50, %s52
      %p56 = scmp.eq.s32.totalorder %s16, 0
      %p57 = por %p55, %p56
      %p58 = scmp.ne.s32.totalorder %s50, %s52
      %p59 = scmp.eq.s32.totalorder %s21, 1
      %p60 = por %p58, %p59
      %p61 = scmp.ne.s32.totalorder %s52, %s53
      %p62 = scmp.eq.s32.totalorder %s21, 0
      %p63 = por %p61, %p62
      %p64 = scmp.ne.s32.totalorder %s52, %s53
      %p65 = scmp.eq.s32.totalorder %s22, 1
      %p66 = por %p64, %p65
      %p68 = scmp.ne.s32.totalorder %s53, %s67
      %p69 = scmp.eq.s32.totalorder %s22, 0
      %p70 = por %p68, %p69
      %s72 = sadd.s32 %s71, 1
      %p75 = scmp.eq.s32.totalorder %s16, 1
      %p76 = scmp.ne.s32.totalorder %s71, %s73
      %p77 = scmp.eq.s32.totalorder %s16, 0
      %p78 = por %p76, %p77
      %p79 = scmp.ne.s32.totalorder %s71, %s73
      %p80 = scmp.eq.s32.totalorder %s21, 1
      %p81 = por %p79, %p80
      %p82 = scmp.ne.s32.totalorder %s73, %s74
      %p83 = scmp.eq.s32.totalorder %s21, 0
      %p84 = por %p82, %p83
      %p85 = scmp.ne.s32.totalorder %s73, %s74
      %p86 = scmp.eq.s32.totalorder %s22, 1
      %p87 = por %p85, %p86
      %p89 = scmp.ne.s32.totalorder %s74, %s88
      %p90 = scmp.eq.s32.totalorder %s22, 0
      %p91 = por %p89, %p90
      %s93 = sadd.s32 %s92, 1
      %p96 = scmp.eq.s32.totalorder %s16, 1
      %p97 = scmp.ne.s32.totalorder %s92, %s94
      %p98 = scmp.eq.s32.totalorder %s16, 0
      %p99 = por %p97, %p98
      %p100 = scmp.ne.s32.totalorder %s92, %s94
      %p101 = scmp.eq.s32.totalorder %s21, 1
      %p102 = por %p100, %p101
      %p103 = scmp.ne.s32.totalorder %s94, %s95
      %p104 = scmp.eq.s32.totalorder %s21, 0
      %p105 = por %p103, %p104
      %p106 = scmp.ne.s32.totalorder %s94, %s95
      %p107 = scmp.eq.s32.totalorder %s22, 1
      %p108 = por %p106, %p107
      %p110 = scmp.ne.s32.totalorder %s95, %s109
      %p111 = scmp.eq.s32.totalorder %s22, 0
      %p112 = por %p110, %p111
      %s114 = sadd.s32 %s113, 1
      %p117 = scmp.eq.s32.totalorder %s16, 1
      %p118 = scmp.ne.s32.totalorder %s113, %s115
      %p119 = scmp.eq.s32.totalorder %s16, 0
      %p120 = por %p118, %p119
      %p121 = scmp.ne.s32.totalorder %s113, %s115
      %p122 = scmp.eq.s32.totalorder %s21, 1
      %p123 = por %p121, %p122
      %p124 = scmp.ne.s32.totalorder %s115, %s116
      %p125 = scmp.eq.s32.totalorder %s21, 0
      %p126 = por %p124, %p125
      %p127 = scmp.ne.s32.totalorder %s115, %s116
      %p128 = scmp.eq.s32.totalorder %s22, 1
      %p129 = por %p127, %p128
      %p131 = scmp.ne.s32.totalorder %s116, %s130
      %p132 = scmp.eq.s32.totalorder %s22, 0
      %p133 = por %p131, %p132
      %s135 = sadd.s32 %s134, 1
      %p138 = scmp.eq.s32.totalorder %s16, 1
      %p139 = scmp.ne.s32.totalorder %s134, %s136
      %p140 = scmp.eq.s32.totalorder %s16, 0
      %p141 = por %p139, %p140
      %p142 = scmp.ne.s32.totalorder %s134, %s136
      %p143 = scmp.eq.s32.totalorder %s21, 1
      %p144 = por %p142, %p143
      %p145 = scmp.ne.s32.totalorder %s136, %s137
      %p146 = scmp.eq.s32.totalorder %s21, 0
      %p147 = por %p145, %p146
      %p148 = scmp.ne.s32.totalorder %s136, %s137
      %p149 = scmp.eq.s32.totalorder %s22, 1
      %p150 = por %p148, %p149
      %p152 = scmp.ne.s32.totalorder %s137, %s151
      %p153 = scmp.eq.s32.totalorder %s22, 0
      %p154 = por %p152, %p153
      %s156 = sadd.s32 %s155, 1
      %p159 = scmp.eq.s32.totalorder %s16, 1
      %p160 = scmp.ne.s32.totalorder %s155, %s157
      %p161 = scmp.eq.s32.totalorder %s16, 0
      %p162 = por %p160, %p161
      %p163 = scmp.ne.s32.totalorder %s155, %s157
      %p164 = scmp.eq.s32.totalorder %s21, 1
      %p165 = por %p163, %p164
      %p166 = scmp.ne.s32.totalorder %s157, %s158
      %p167 = scmp.eq.s32.totalorder %s21, 0
      %p168 = por %p166, %p167
      %p169 = scmp.ne.s32.totalorder %s157, %s158
      %p170 = scmp.eq.s32.totalorder %s22, 1
      %p171 = por %p169, %p170
      %p173 = scmp.ne.s32.totalorder %s158, %s172
      %p174 = scmp.eq.s32.totalorder %s22, 0
      %p175 = por %p173, %p174
      %s176 = ssub.s32 %s16, %s23
      %p177 = scmp.eq.s32.totalorder %s176, 0
      %s179 = sadd.s32 %s178, 1
      %s180 = scalar_select %p177, %s178, %s179
      %p183 = pneg %p177
      %p184 = scmp.eq.s32.totalorder %s16, 1
      %p185 = por %p183, %p184
      %p186 = scmp.ne.s32.totalorder %s178, %s181
      %p187 = scmp.eq.s32.totalorder %s16, 0
      %p188 = por %p186, %p187
      %p189 = scmp.ne.s32.totalorder %s178, %s181
      %p190 = scmp.eq.s32.totalorder %s21, 1
      %p191 = por %p189, %p190
      %p192 = scmp.ne.s32.totalorder %s181, %s182
      %p193 = scmp.eq.s32.totalorder %s21, 0
      %p194 = por %p192, %p193
      %p195 = scmp.ne.s32.totalorder %s181, %s182
      %p196 = scmp.eq.s32.totalorder %s22, 1
      %p197 = por %p195, %p196
      %p199 = scmp.ne.s32.totalorder %s182, %s198
      %p200 = scmp.eq.s32.totalorder %s22, 0
      %p201 = por %p199, %p200
      %p202 = scmp.le.s32.totalorder 1, %s16
      %p203 = scmp.lt.s32.totalorder %s16, 3
      %p204 = pnand %p202, %p203
      %p205 = pneg %p204
      // Predicated region
      $region9: #{tpu_custom_call.1} parent=5 // pred_check
        _
      $region10: #{tpu_custom_call.1} parent=5 // pred_check_branch
        %207 = sbr.rel (%p204) target = $region12
      $region11: #{tpu_custom_call.1} parent=5 // pred_region
        %s208 = ssub.s32 %s16, 1
        // Predicated region
        $region13: #{tpu_custom_call.1} parent=11 // pred_check
          %p209 = pneg %p63
        $region14: #{tpu_custom_call.1} parent=11 // pred_check_branch
          %211 = sbr.rel (%p209) target = $region16
        $region15: #{tpu_custom_call.1} parent=11 // pred_region
          _
        $region16: #{tpu_custom_call.1} parent=11 // pred_fallthru
          _
        // Predicated region
        $region17: #{tpu_custom_call.1} parent=11 // pred_check
          %p212 = pneg %p84
        $region18: #{tpu_custom_call.1} parent=11 // pred_check_branch
          %214 = sbr.rel (%p212) target = $region20
        $region19: #{tpu_custom_call.1} parent=11 // pred_region
          _
        $region20: #{tpu_custom_call.1} parent=11 // pred_fallthru
          _
        // Predicated region
        $region21: #{tpu_custom_call.1} parent=11 // pred_check
          %p215 = pneg %p105
        $region22: #{tpu_custom_call.1} parent=11 // pred_check_branch
          %217 = sbr.rel (%p215) target = $region24
        $region23: #{tpu_custom_call.1} parent=11 // pred_region
          _
        $region24: #{tpu_custom_call.1} parent=11 // pred_fallthru
          _
        // Predicated region
        $region25: #{tpu_custom_call.1} parent=11 // pred_check
          %p218 = pneg %p126
        $region26: #{tpu_custom_call.1} parent=11 // pred_check_branch
          %220 = sbr.rel (%p218) target = $region28
        $region27: #{tpu_custom_call.1} parent=11 // pred_region
          _
        $region28: #{tpu_custom_call.1} parent=11 // pred_fallthru
          _
        // Predicated region
        $region29: #{tpu_custom_call.1} parent=11 // pred_check
          %p221 = pneg %p147
        $region30: #{tpu_custom_call.1} parent=11 // pred_check_branch
          %223 = sbr.rel (%p221) target = $region32
        $region31: #{tpu_custom_call.1} parent=11 // pred_region
          _
        $region32: #{tpu_custom_call.1} parent=11 // pred_fallthru
          _
        // Predicated region
        $region33: #{tpu_custom_call.1} parent=11 // pred_check
          %p224 = pneg %p168
        $region34: #{tpu_custom_call.1} parent=11 // pred_check_branch
          %226 = sbr.rel (%p224) target = $region36
        $region35: #{tpu_custom_call.1} parent=11 // pred_region
          _
        $region36: #{tpu_custom_call.1} parent=11 // pred_fallthru
          _
      $region12: #{tpu_custom_call.1} parent=5 // pred_fallthru
        _
      %p227 = scmp.lt.s32.totalorder %s16, 2
      // Predicated region
      $region37: #{tpu_custom_call.1} parent=5 // pred_check
        %p228 = pneg %p227
      $region38: #{tpu_custom_call.1} parent=5 // pred_check_branch
        %230 = sbr.rel (%p228) target = $region40
      $region39: #{tpu_custom_call.1} parent=5 // pred_region
        // Predicated region
        $region41: #{tpu_custom_call.1} parent=39 // pred_check
          %p231 = pneg %p36
        $region42: #{tpu_custom_call.1} parent=39 // pred_check_branch
          %233 = sbr.rel (%p231) target = $region44
        $region43: #{tpu_custom_call.1} parent=39 // pred_region
          %p234 = scmp.lt.s32.totalorder %s16, 1
          %s235 = scalar_select %p234, %s16, 1
          %s236 = smul.addr %s235, 2
          %s237 = smul.addr %s236, 4
          %s238 = scalar_lea.vmem %s0, %s237
        $region44: #{tpu_custom_call.1} parent=39 // pred_fallthru
          _
      $region40: #{tpu_custom_call.1} parent=5 // pred_fallthru
        _
      %p239 = scmp.le.s32.totalorder 1, %s16
      %p240 = scmp.lt.s32.totalorder %s16, 3
      %p241 = pnand %p239, %p240
      %p242 = pneg %p241
      // Predicated region
      $region45: #{tpu_custom_call.1} parent=5 // pred_check
        _
      $region46: #{tpu_custom_call.1} parent=5 // pred_check_branch
        %244 = sbr.rel (%p241) target = $region48
      $region47: #{tpu_custom_call.1} parent=5 // pred_region
        %s245 = ssub.s32 %s16, 1
        %p246 = scmp.lt.s32.totalorder %s21, 1
        %s247 = scalar_select %p246, %s21, 1
        %s248 = smul.addr %s247, 2
        %s249 = smul.addr %s248, 4
        %s250 = scalar_lea.vmem %s0, %s249
        %p251 = pneg %p42
        %p252 = pneg %p39
        %p253 = pneg %p63
        %p254 = pneg %p60
        %p255 = pneg %p84
        %p256 = pneg %p81
        %p257 = pneg %p105
        %p258 = pneg %p102
        %p259 = pneg %p126
        %p260 = pneg %p123
        %p261 = pneg %p147
        %p262 = pneg %p144
        %p263 = pneg %p168
        %p264 = pneg %p165
        %p265 = pneg %p194
        %p266 = pneg %p191
        %s267 = sand.u32 %s181, 1
        %s268 = scalar_lea.sflag [#allocation4], %s267
        %s269 = sand.u32 %s181, 1
        %s270 = smul.addr %s269, 8
        %s271 = scalar_lea.vmem [#allocation3], %s270
        %p272 = scmp.lt.s32.totalorder %s21, 1
        %s273 = scalar_select %p272, %s21, 1
        %s274 = smul.addr %s273, 2
        %s275 = smul.addr %s274, 4
        %s276 = scalar_lea.vmem %s0, %s275
        %v277 = vld [vmem:[%s276] sm:$0xff]
        %v278 = vld [vmem:[%s1] sm:$0xff]
        %v279 = vld [vmem:[%s1 + $0x8] sm:$0xff]
        %v280 = vld [vmem:[%s2] sm:$0xff]
        %v281 = vld [vmem:[%s2 + $0x8] sm:$0xff]
        %283 = vset.pattern.permute.xlu0 0
        %284 = vperm.xlu0 %283, %v280
        %v285 = vpop.permute.xlu0 %284
        %288 = vset.pattern.permute.xlu0 0
        %289 = vperm.xlu0 %288, %v281
        %v290 = vpop.permute.xlu0 %289
        %v293 = vcombine.high %v277, %v277
        %vm294 = vcmask 31744
        %v296 = vsel %vm294, %v278, 0
        %v299 = vsel %vm294, %v279, 0
        %vm301 = vcmask 1043456
        %v302 = vsel %vm301, %v277, 0
        %v304 = vsel %vm301, %v293, 0
        %306 = vmatprep.subr.mxu0 0.0
        %307 = vmatpush1.msra.mxu0 0.0
        %308 = vmatprep.subr.mxu0 0.0
        %309 = vmatpush1.msra.mxu0 0.0
        %310 = vmatprep.subr.mxu0 0.0
        %311 = vmatpush1.msra.mxu0 0.0
        %312 = vmatprep.subr.mxu0 0.0
        %313 = vmatpush1.msra.mxu0 0.0
        %314 = vmatprep.subr.mxu0 0.0
        %315 = vmatpush1.msra.mxu0 0.0
        %316 = vmatprep.subr.mxu0 0.0
        %317 = vmatpush1.msra.mxu0 0.0
        %318 = vmatprep.subr.mxu0 0.0
        %319 = vmatpush1.msra.mxu0 0.0
        %320 = vmatprep.subr.mxu0 0.0
        %321 = vmatpush1.msra.mxu0 0.0
        %322 = vmatprep.subr.mxu0 0.0
        %323 = vmatpush1.msra.mxu0 0.0
        %324 = vmatprep.subr.mxu0 0.0
        %325 = vmatpush1.msra.mxu0 0.0
        %326 = vmatprep.subr.mxu0 0.0
        %327 = vmatpush1.msra.mxu0 0.0
        %328 = vmatprep.subr.mxu0 0.0
        %329 = vmatpush1.msra.mxu0 0.0
        %330 = vmatprep.subr.mxu0 0.0
        %331 = vmatpush1.msra.mxu0 0.0
        %332 = vmatprep.subr.mxu0 0.0
        %333 = vmatpush1.msra.mxu0 0.0
        %334 = vmatprep.subr.mxu0 0.0
        %335 = vmatpush1.msra.mxu0 0.0
        %336 = vmatprep.subr.mxu0 %v304
        %337 = vmatpush1.msra.mxu0 %v302
        %338 = vmatprep.subr.mxu0 0.0
        %339 = vmatpush2.msra.mxu0 0.0
        %340 = vmatprep.subr.mxu0 0.0
        %341 = vmatpush2.msra.mxu0 0.0
        %342 = vmatprep.subr.mxu0 0.0
        %343 = vmatpush2.msra.mxu0 0.0
        %344 = vmatprep.subr.mxu0 0.0
        %345 = vmatpush2.msra.mxu0 0.0
        %346 = vmatprep.subr.mxu0 0.0
        %347 = vmatpush2.msra.mxu0 0.0
        %348 = vmatprep.subr.mxu0 0.0
        %349 = vmatpush2.msra.mxu0 0.0
        %350 = vmatprep.subr.mxu0 0.0
        %351 = vmatpush2.msra.mxu0 0.0
        %352 = vmatprep.subr.mxu0 0.0
        %353 = vmatpush2.msra.mxu0 0.0
        %354 = vmatprep.subr.mxu0 0.0
        %355 = vmatpush2.msra.mxu0 0.0
        %356 = vmatprep.subr.mxu0 0.0
        %357 = vmatpush2.msra.mxu0 0.0
        %358 = vmatprep.subr.mxu0 0.0
        %359 = vmatpush2.msra.mxu0 0.0
        %360 = vmatprep.subr.mxu0 0.0
        %361 = vmatpush2.msra.mxu0 0.0
        %362 = vmatprep.subr.mxu0 0.0
        %363 = vmatpush2.msra.mxu0 0.0
        %364 = vmatprep.subr.mxu0 0.0
        %365 = vmatpush2.msra.mxu0 0.0
        %366 = vmatprep.subr.mxu0 0.0
        %367 = vmatpush2.msra.mxu0 0.0
        %368 = vmatprep.subr.mxu0 0.0
        %369 = vmatpush2.msra.mxu0 0.0
        %370 = vmatprep.mubr.f32.mxu0 0.0
        %371 = vmatmul.mubr.f32.gmra.mxu0 %v296
        %v372 = vpop.f32.mrf.mxu0
        %v373 = vadd.f32 %v285, %v372
        %v374 = vpop.f32.mrf.mxu0
        %v375 = vadd.f32 %v285, %v374
        %376 = vmatprep.mubr.f32.mxu0 0.0
        %377 = vmatmul.mubr.f32.gmra.mxu0 %v299
        %v378 = vpop.f32.mrf.mxu0
        %v379 = vadd.f32 %v290, %v378
        %v380 = vpop.f32.mrf.mxu0
        %v381 = vadd.f32 %v290, %v380
        %382 = vdwg.mxu0
        %v383 = vmax.f32 %v373, 0.0
        %v384 = vmax.f32 %v375, 0.0
        %v385 = vmax.f32 %v379, 0.0
        %v386 = vmax.f32 %v381, 0.0
        %v387 = vmin.f32 %v383, 6.0
        %v388 = vmin.f32 %v384, 6.0
        %v389 = vmin.f32 %v385, 6.0
        %v390 = vmin.f32 %v386, 6.0
        %391 = vst [vmem:[#allocation2] sm:$0xff] 0.0
        %392 = vst [vmem:[#allocation2 + $0x20] sm:$0xff] 0.0
        %393 = vst [vmem:[#allocation2 + $0x18] sm:$0xff] 0.0
        %394 = vst [vmem:[#allocation2 + $0x38] sm:$0xff] 0.0
        %395 = vst [vmem:[#allocation2 + $0x8] sm:$0xff] %v387
        %396 = vst [vmem:[#allocation2 + $0x10] sm:$0xff] %v388
        %397 = vst [vmem:[#allocation2 + $0x28] sm:$0xff] %v389
        %398 = vst [vmem:[#allocation2 + $0x30] sm:$0xff] %v390
        %v399 = vlaneseq
        %v400 = vand.u32 %v399, 127
        %v401 = vadd.s32 %v400, 128
        %vm402 = vcmp.lt.s32.totalorder %v400, 0
        %v403 = vsub.s32 0, %v400
        %v404 = vsel %vm402, %v403, %v400
        %v405 = vshrl.u32 %v404, 4
        %v406 = vand.u32 %v404, 15
        %v407 = vsub.s32 0, %v406
        %v408 = vsel %vm402, %v407, %v406
        %vm409 = vcmp.lt.s32.totalorder %v401, 0
        %v410 = vsub.s32 0, %v401
        %v411 = vsel %vm409, %v410, %v401
        %v412 = vshrl.u32 %v411, 4
        %v413 = vand.u32 %v411, 15
        %v414 = vsub.s32 0, %v413
        %v415 = vsel %vm409, %v414, %v413
        %vm416 = vcmp.ne.s32.totalorder %v408, 0
        %vm417 = vcmp.ne.s32.totalorder %v415, 0
        %vm418 = vcmp.lt.s32.totalorder %v408, 0
        %vm419 = vcmp.lt.s32.totalorder %v415, 0
        %vm420 = vmand %vm418, %vm416
        %vm421 = vmand %vm419, %vm417
        %v422 = vadd.s32 %v408, 16
        %v423 = vadd.s32 %v415, 16
        %v424 = vsel %vm420, %v422, %v408
        %v425 = vsel %vm421, %v423, %v415
        %vm426 = vcmp.ge.s32.totalorder %v424, 1
        %vm427 = vcmp.ge.s32.totalorder %v425, 1
        %vm428 = vcmp.le.s32.totalorder %v424, 14
        %vm429 = vcmp.le.s32.totalorder %v425, 14
        %v430 = vld [vmem:[%s3] sm:$0xff]
        %v431 = vld [vmem:[%s3 + $0x8] sm:$0xff]
        %433 = vset.pattern.permute.xlu0 4
        %434 = vperm.xlu0 %433, %v430
        %v435 = vpop.permute.xlu0 %434
        %438 = vset.pattern.permute.xlu0 4
        %439 = vperm.xlu0 %438, %v431
        %v440 = vpop.permute.xlu0 %439
        %v442 = vmul.f32 %v387, %v435
        %v443 = vmul.f32 %v388, %v435
        %v444 = vmul.f32 %v389, %v440
        %v445 = vmul.f32 %v390, %v440
        %v446 = vld [vmem:[#allocation2] sm:$0xff]
        %v447 = vld [vmem:[#allocation2 + $0x8] sm:$0xff]
        %v448 = vld [vmem:[#allocation2 + $0x10] sm:$0xff]
        %v449 = vld [vmem:[#allocation2 + $0x20] sm:$0xff]
        %v450 = vld [vmem:[#allocation2 + $0x28] sm:$0xff]
        %v451 = vld [vmem:[#allocation2 + $0x30] sm:$0xff]
        %v452 = vsel %vm426, 1, 0
        %v453 = vsel %vm427, 1, 0
        %vm454 = vcmp.eq.s32.totalorder %v452, 1
        %vm455 = vcmp.eq.s32.totalorder %v453, 1
        %462 = vrot.lane.b32.xlu0 %v446, 17
        %v463 = vpop.permute.xlu0 %462
        %464 = vrot.lane.b32.xlu0 %v447, 17
        %v465 = vpop.permute.xlu0 %464
        %466 = vrot.lane.b32.xlu0 %v448, 17
        %v467 = vpop.permute.xlu0 %466
        %468 = vrot.lane.b32.xlu0 %v449, 17
        %v469 = vpop.permute.xlu0 %468
        %470 = vrot.lane.b32.xlu0 %v450, 17
        %v471 = vpop.permute.xlu0 %470
        %472 = vrot.lane.b32.xlu0 %v451, 17
        %v473 = vpop.permute.xlu0 %472
        %vm474 = vcmask 138240
        %v475 = vsel %vm474, %v463, %v465
        %v476 = vsel %vm474, %v465, %v467
        %v477 = vsel %vm474, %v469, %v471
        %v478 = vsel %vm474, %v471, %v473
        %v483 = vsel %vm454, %v475, 0.0
        %v484 = vsel %vm455, %v476, 0.0
        %v485 = vsel %vm454, %v477, 0.0
        %v486 = vsel %vm455, %v478, 0.0
        %487 = vset.pattern.permute.xlu0 0
        %488 = vperm.xlu0 %487, %v430
        %v489 = vpop.permute.xlu0 %488
        %491 = vset.pattern.permute.xlu0 0
        %492 = vperm.xlu0 %491, %v431
        %v493 = vpop.permute.xlu0 %492
        %v495 = vmul.f32 %v483, %v489
        %v496 = vmul.f32 %v484, %v489
        %v497 = vmul.f32 %v485, %v493
        %v498 = vmul.f32 %v486, %v493
        %v499 = vadd.f32 %v442, %v495
        %v500 = vadd.f32 %v443, %v496
        %v501 = vadd.f32 %v444, %v497
        %v502 = vadd.f32 %v445, %v498
        %503 = vset.pattern.permute.xlu0 1
        %504 = vperm.xlu0 %503, %v430
        %v505 = vpop.permute.xlu0 %504
        %507 = vset.pattern.permute.xlu0 1
        %508 = vperm.xlu0 %507, %v431
        %v509 = vpop.permute.xlu0 %508
        %v511 = vmul.f32 %v446, %v505
        %v512 = vmul.f32 %v447, %v505
        %v513 = vmul.f32 %v448, %v505
        %v514 = vmul.f32 %v449, %v509
        %v515 = vmul.f32 %v450, %v509
        %v516 = vmul.f32 %v451, %v509
        %523 = vrot.lane.b32.xlu0 %v511, 16
        %v524 = vpop.permute.xlu0 %523
        %525 = vrot.lane.b32.xlu0 %v512, 16
        %v526 = vpop.permute.xlu0 %525
        %527 = vrot.lane.b32.xlu0 %v513, 16
        %v528 = vpop.permute.xlu0 %527
        %529 = vrot.lane.b32.xlu0 %v514, 16
        %v530 = vpop.permute.xlu0 %529
        %531 = vrot.lane.b32.xlu0 %v515, 16
        %v532 = vpop.permute.xlu0 %531
        %533 = vrot.lane.b32.xlu0 %v516, 16
        %v534 = vpop.permute.xlu0 %533
        %vm535 = vcmask 130048
        %v536 = vsel %vm535, %v524, %v526
        %v537 = vsel %vm535, %v526, %v528
        %v538 = vsel %vm535, %v530, %v532
        %v539 = vsel %vm535, %v532, %v534
        %v544 = vadd.f32 %v499, %v536
        %v545 = vadd.f32 %v500, %v537
        %v546 = vadd.f32 %v501, %v538
        %v547 = vadd.f32 %v502, %v539
        %v548 = vsel %vm428, 1, 0
        %v549 = vsel %vm429, 1, 0
        %vm550 = vcmp.eq.s32.totalorder %v548, 1
        %vm551 = vcmp.eq.s32.totalorder %v549, 1
        %552 = vrot.lane.b32.xlu0 %v446, 15
        %v553 = vpop.permute.xlu0 %552
        %554 = vrot.lane.b32.xlu0 %v447, 15
        %v555 = vpop.permute.xlu0 %554
        %556 = vrot.lane.b32.xlu0 %v448, 15
        %v557 = vpop.permute.xlu0 %556
        %558 = vrot.lane.b32.xlu0 %v449, 15
        %v559 = vpop.permute.xlu0 %558
        %560 = vrot.lane.b32.xlu0 %v450, 15
        %v561 = vpop.permute.xlu0 %560
        %562 = vrot.lane.b32.xlu0 %v451, 15
        %v563 = vpop.permute.xlu0 %562
        %vm564 = vcmask 121856
        %v565 = vsel %vm564, %v553, %v555
        %v566 = vsel %vm564, %v555, %v557
        %v567 = vsel %vm564, %v559, %v561
        %v568 = vsel %vm564, %v561, %v563
        %v573 = vsel %vm550, %v565, 0.0
        %v574 = vsel %vm551, %v566, 0.0
        %v575 = vsel %vm550, %v567, 0.0
        %v576 = vsel %vm551, %v568, 0.0
        %577 = vset.pattern.permute.xlu0 2
        %578 = vperm.xlu0 %577, %v430
        %v579 = vpop.permute.xlu0 %578
        %581 = vset.pattern.permute.xlu0 2
        %582 = vperm.xlu0 %581, %v431
        %v583 = vpop.permute.xlu0 %582
        %v585 = vmul.f32 %v573, %v579
        %v586 = vmul.f32 %v574, %v579
        %v587 = vmul.f32 %v575, %v583
        %v588 = vmul.f32 %v576, %v583
        %v589 = vadd.f32 %v544, %v585
        %v590 = vadd.f32 %v545, %v586
        %v591 = vadd.f32 %v546, %v587
        %v592 = vadd.f32 %v547, %v588
        %593 = vrot.lane.b32.xlu0 %v446, 1
        %v594 = vpop.permute.xlu0 %593
        %595 = vrot.lane.b32.xlu0 %v447, 1
        %v596 = vpop.permute.xlu0 %595
        %597 = vrot.lane.b32.xlu0 %v448, 1
        %v598 = vpop.permute.xlu0 %597
        %599 = vrot.lane.b32.xlu0 %v449, 1
        %v600 = vpop.permute.xlu0 %599
        %601 = vrot.lane.b32.xlu0 %v450, 1
        %v602 = vpop.permute.xlu0 %601
        %603 = vrot.lane.b32.xlu0 %v451, 1
        %v604 = vpop.permute.xlu0 %603
        %vm605 = vcmask 7168
        %v606 = vsel %vm605, %v594, %v596
        %v607 = vsel %vm605, %v596, %v598
        %v608 = vsel %vm605, %v600, %v602
        %v609 = vsel %vm605, %v602, %v604
        %v614 = vsel %vm454, %v606, 0.0
        %v615 = vsel %vm455, %v607, 0.0
        %v616 = vsel %vm454, %v608, 0.0
        %v617 = vsel %vm455, %v609, 0.0
        %618 = vset.pattern.permute.xlu0 3
        %619 = vperm.xlu0 %618, %v430
        %v620 = vpop.permute.xlu0 %619
        %622 = vset.pattern.permute.xlu0 3
        %623 = vperm.xlu0 %622, %v431
        %v624 = vpop.permute.xlu0 %623
        %v626 = vmul.f32 %v614, %v620
        %v627 = vmul.f32 %v615, %v620
        %v628 = vmul.f32 %v616, %v624
        %v629 = vmul.f32 %v617, %v624
        %v630 = vadd.f32 %v589, %v626
        %v631 = vadd.f32 %v590, %v627
        %v632 = vadd.f32 %v591, %v628
        %v633 = vadd.f32 %v592, %v629
        %v634 = vld [vmem:[#allocation2 + $0x8] sm:$0xff]
        %v635 = vld [vmem:[#allocation2 + $0x10] sm:$0xff]
        %v636 = vld [vmem:[#allocation2 + $0x18] sm:$0xff]
        %v637 = vld [vmem:[#allocation2 + $0x28] sm:$0xff]
        %v638 = vld [vmem:[#allocation2 + $0x30] sm:$0xff]
        %v639 = vld [vmem:[#allocation2 + $0x38] sm:$0xff]
        %646 = vrot.lane.b32.xlu0 %v634, 127
        %v647 = vpop.permute.xlu0 %646
        %648 = vrot.lane.b32.xlu0 %v635, 127
        %v649 = vpop.permute.xlu0 %648
        %650 = vrot.lane.b32.xlu0 %v636, 127
        %v651 = vpop.permute.xlu0 %650
        %652 = vrot.lane.b32.xlu0 %v637, 127
        %v653 = vpop.permute.xlu0 %652
        %654 = vrot.lane.b32.xlu0 %v638, 127
        %v655 = vpop.permute.xlu0 %654
        %656 = vrot.lane.b32.xlu0 %v639, 127
        %v657 = vpop.permute.xlu0 %656
        %vm658 = vcmask 1039360
        %v659 = vsel %vm658, %v647, %v649
        %v660 = vsel %vm658, %v649, %v651
        %v661 = vsel %vm658, %v653, %v655
        %v662 = vsel %vm658, %v655, %v657
        %v667 = vsel %vm550, %v659, 0.0
        %v668 = vsel %vm551, %v660, 0.0
        %v669 = vsel %vm550, %v661, 0.0
        %v670 = vsel %vm551, %v662, 0.0
        %671 = vset.pattern.permute.xlu0 5
        %672 = vperm.xlu0 %671, %v430
        %v673 = vpop.permute.xlu0 %672
        %675 = vset.pattern.permute.xlu0 5
        %676 = vperm.xlu0 %675, %v431
        %v677 = vpop.permute.xlu0 %676
        %v679 = vmul.f32 %v667, %v673
        %v680 = vmul.f32 %v668, %v673
        %v681 = vmul.f32 %v669, %v677
        %v682 = vmul.f32 %v670, %v677
        %v683 = vadd.f32 %v630, %v679
        %v684 = vadd.f32 %v631, %v680
        %v685 = vadd.f32 %v632, %v681
        %v686 = vadd.f32 %v633, %v682
        %687 = vrot.lane.b32.xlu0 %v634, 113
        %v688 = vpop.permute.xlu0 %687
        %689 = vrot.lane.b32.xlu0 %v635, 113
        %v690 = vpop.permute.xlu0 %689
        %691 = vrot.lane.b32.xlu0 %v636, 113
        %v692 = vpop.permute.xlu0 %691
        %693 = vrot.lane.b32.xlu0 %v637, 113
        %v694 = vpop.permute.xlu0 %693
        %695 = vrot.lane.b32.xlu0 %v638, 113
        %v696 = vpop.permute.xlu0 %695
        %697 = vrot.lane.b32.xlu0 %v639, 113
        %v698 = vpop.permute.xlu0 %697
        %vm699 = vcmask 924672
        %v700 = vsel %vm699, %v688, %v690
        %v701 = vsel %vm699, %v690, %v692
        %v702 = vsel %vm699, %v694, %v696
        %v703 = vsel %vm699, %v696, %v698
        %v708 = vsel %vm454, %v700, 0.0
        %v709 = vsel %vm455, %v701, 0.0
        %v710 = vsel %vm454, %v702, 0.0
        %v711 = vsel %vm455, %v703, 0.0
        %712 = vset.pattern.permute.xlu0 6
        %713 = vperm.xlu0 %712, %v430
        %v714 = vpop.permute.xlu0 %713
        %716 = vset.pattern.permute.xlu0 6
        %717 = vperm.xlu0 %716, %v431
        %v718 = vpop.permute.xlu0 %717
        %v720 = vmul.f32 %v708, %v714
        %v721 = vmul.f32 %v709, %v714
        %v722 = vmul.f32 %v710, %v718
        %v723 = vmul.f32 %v711, %v718
        %v724 = vadd.f32 %v683, %v720
        %v725 = vadd.f32 %v684, %v721
        %v726 = vadd.f32 %v685, %v722
        %v727 = vadd.f32 %v686, %v723
        %728 = vset.pattern.permute.xlu0 7
        %729 = vperm.xlu0 %728, %v430
        %v730 = vpop.permute.xlu0 %729
        %732 = vset.pattern.permute.xlu0 7
        %733 = vperm.xlu0 %732, %v431
        %v734 = vpop.permute.xlu0 %733
        %v736 = vmul.f32 %v634, %v730
        %v737 = vmul.f32 %v635, %v730
        %v738 = vmul.f32 %v636, %v730
        %v739 = vmul.f32 %v637, %v734
        %v740 = vmul.f32 %v638, %v734
        %v741 = vmul.f32 %v639, %v734
        %748 = vrot.lane.b32.xlu0 %v736, 112
        %v749 = vpop.permute.xlu0 %748
        %750 = vrot.lane.b32.xlu0 %v737, 112
        %v751 = vpop.permute.xlu0 %750
        %752 = vrot.lane.b32.xlu0 %v738, 112
        %v753 = vpop.permute.xlu0 %752
        %754 = vrot.lane.b32.xlu0 %v739, 112
        %v755 = vpop.permute.xlu0 %754
        %756 = vrot.lane.b32.xlu0 %v740, 112
        %v757 = vpop.permute.xlu0 %756
        %758 = vrot.lane.b32.xlu0 %v741, 112
        %v759 = vpop.permute.xlu0 %758
        %vm760 = vcmask 916480
        %v761 = vsel %vm760, %v749, %v751
        %v762 = vsel %vm760, %v751, %v753
        %v763 = vsel %vm760, %v755, %v757
        %v764 = vsel %vm760, %v757, %v759
        %v769 = vadd.f32 %v724, %v761
        %v770 = vadd.f32 %v725, %v762
        %v771 = vadd.f32 %v726, %v763
        %v772 = vadd.f32 %v727, %v764
        %773 = vrot.lane.b32.xlu0 %v634, 111
        %v774 = vpop.permute.xlu0 %773
        %775 = vrot.lane.b32.xlu0 %v635, 111
        %v776 = vpop.permute.xlu0 %775
        %777 = vrot.lane.b32.xlu0 %v636, 111
        %v778 = vpop.permute.xlu0 %777
        %779 = vrot.lane.b32.xlu0 %v637, 111
        %v780 = vpop.permute.xlu0 %779
        %781 = vrot.lane.b32.xlu0 %v638, 111
        %v782 = vpop.permute.xlu0 %781
        %783 = vrot.lane.b32.xlu0 %v639, 111
        %v784 = vpop.permute.xlu0 %783
        %vm785 = vcmask 908288
        %v786 = vsel %vm785, %v774, %v776
        %v787 = vsel %vm785, %v776, %v778
        %v788 = vsel %vm785, %v780, %v782
        %v789 = vsel %vm785, %v782, %v784
        %v794 = vsel %vm550, %v786, 0.0
        %v795 = vsel %vm551, %v787, 0.0
        %v796 = vsel %vm550, %v788, 0.0
        %v797 = vsel %vm551, %v789, 0.0
        %798 = vset.pattern.permute.xlu0 8
        %799 = vperm.xlu0 %798, %v430
        %v800 = vpop.permute.xlu0 %799
        %802 = vset.pattern.permute.xlu0 8
        %803 = vperm.xlu0 %802, %v431
        %v804 = vpop.permute.xlu0 %803
        %v806 = vmul.f32 %v794, %v800
        %v807 = vmul.f32 %v795, %v800
        %v808 = vmul.f32 %v796, %v804
        %v809 = vmul.f32 %v797, %v804
        %v810 = vadd.f32 %v769, %v806
        %v811 = vadd.f32 %v770, %v807
        %v812 = vadd.f32 %v771, %v808
        %v813 = vadd.f32 %v772, %v809
        %v814 = vld [vmem:[%s4] sm:$0xff]
        %v815 = vld [vmem:[%s4 + $0x8] sm:$0xff]
        %817 = vset.pattern.permute.xlu0 0
        %818 = vperm.xlu0 %817, %v814
        %v819 = vpop.permute.xlu0 %818
        %822 = vset.pattern.permute.xlu0 0
        %823 = vperm.xlu0 %822, %v815
        %v824 = vpop.permute.xlu0 %823
        %v826 = vadd.f32 %v810, %v819
        %v827 = vadd.f32 %v811, %v819
        %v828 = vadd.f32 %v812, %v824
        %v829 = vadd.f32 %v813, %v824
        %v830 = vmax.f32 %v826, 0.0
        %v831 = vmax.f32 %v827, 0.0
        %v832 = vmax.f32 %v828, 0.0
        %v833 = vmax.f32 %v829, 0.0
        %v834 = vmin.f32 %v830, 6.0
        %v835 = vmin.f32 %v831, 6.0
        %v836 = vmin.f32 %v832, 6.0
        %v837 = vmin.f32 %v833, 6.0
        %v838 = vld [vmem:[%s5] sm:$0xf]
        %v839 = vld [vmem:[%s6] sm:$0xf]
        %841 = vset.pattern.permute.xlu0 0
        %842 = vperm.xlu0 %841, %v839
        %v843 = vpop.permute.xlu0 %842
        %v846 = vsel %vm535, %v838, 0
        %848 = vmatprep.subr.mxu0 0.0
        %849 = vmatpush1.msra.mxu0 0.0
        %850 = vmatprep.subr.mxu0 0.0
        %851 = vmatpush1.msra.mxu0 0.0
        %852 = vmatprep.subr.mxu0 0.0
        %853 = vmatpush1.msra.mxu0 0.0
        %854 = vmatprep.subr.mxu0 0.0
        %855 = vmatpush1.msra.mxu0 0.0
        %856 = vmatprep.subr.mxu0 0.0
        %857 = vmatpush1.msra.mxu0 0.0
        %858 = vmatprep.subr.mxu0 0.0
        %859 = vmatpush1.msra.mxu0 0.0
        %860 = vmatprep.subr.mxu0 0.0
        %861 = vmatpush1.msra.mxu0 0.0
        %862 = vmatprep.subr.mxu0 0.0
        %863 = vmatpush1.msra.mxu0 0.0
        %864 = vmatprep.subr.mxu0 0.0
        %865 = vmatpush1.msra.mxu0 0.0
        %866 = vmatprep.subr.mxu0 0.0
        %867 = vmatpush1.msra.mxu0 0.0
        %868 = vmatprep.subr.mxu0 0.0
        %869 = vmatpush1.msra.mxu0 0.0
        %870 = vmatprep.subr.mxu0 0.0
        %871 = vmatpush1.msra.mxu0 0.0
        %872 = vmatprep.subr.mxu0 0.0
        %873 = vmatpush1.msra.mxu0 0.0
        %874 = vmatprep.subr.mxu0 0.0
        %875 = vmatpush1.msra.mxu0 0.0
        %876 = vmatprep.subr.mxu0 %v837
        %877 = vmatpush1.msra.mxu0 %v836
        %878 = vmatprep.subr.mxu0 %v835
        %879 = vmatpush1.msra.mxu0 %v834
        %880 = vmatprep.subr.mxu0 0.0
        %881 = vmatpush2.msra.mxu0 0.0
        %882 = vmatprep.subr.mxu0 0.0
        %883 = vmatpush2.msra.mxu0 0.0
        %884 = vmatprep.subr.mxu0 0.0
        %885 = vmatpush2.msra.mxu0 0.0
        %886 = vmatprep.subr.mxu0 0.0
        %887 = vmatpush2.msra.mxu0 0.0
        %888 = vmatprep.subr.mxu0 0.0
        %889 = vmatpush2.msra.mxu0 0.0
        %890 = vmatprep.subr.mxu0 0.0
        %891 = vmatpush2.msra.mxu0 0.0
        %892 = vmatprep.subr.mxu0 0.0
        %893 = vmatpush2.msra.mxu0 0.0
        %894 = vmatprep.subr.mxu0 0.0
        %895 = vmatpush2.msra.mxu0 0.0
        %896 = vmatprep.subr.mxu0 0.0
        %897 = vmatpush2.msra.mxu0 0.0
        %898 = vmatprep.subr.mxu0 0.0
        %899 = vmatpush2.msra.mxu0 0.0
        %900 = vmatprep.subr.mxu0 0.0
        %901 = vmatpush2.msra.mxu0 0.0
        %902 = vmatprep.subr.mxu0 0.0
        %903 = vmatpush2.msra.mxu0 0.0
        %904 = vmatprep.subr.mxu0 0.0
        %905 = vmatpush2.msra.mxu0 0.0
        %906 = vmatprep.subr.mxu0 0.0
        %907 = vmatpush2.msra.mxu0 0.0
        %908 = vmatprep.subr.mxu0 0.0
        %909 = vmatpush2.msra.mxu0 0.0
        %910 = vmatprep.subr.mxu0 0.0
        %911 = vmatpush2.msra.mxu0 0.0
        %912 = vmatprep.mubr.f32.mxu0 0.0
        %913 = vmatmul.mubr.f32.gmra.mxu0 %v846
        %v914 = vpop.f32.mrf.mxu0
        %v915 = vadd.f32 %v843, %v914
        %v916 = vpop.f32.mrf.mxu0
        %v917 = vadd.f32 %v843, %v916
        %918 = vdwg.mxu0
        %v920 = vadd.f32 %v915, %v277
        %v921 = vadd.f32 %v917, %v293
        %v924 = vcombine.low %v920, %v921
        %926 = vst [vmem:[%s271] sm:$0xff] %v924
        %s927 = sand.u32 %s181, 1
        %s928 = scalar_lea.sflag [#allocation4], %s927
        %s929 = sand.u32 %s181, 1
        %s930 = smul.addr %s929, 8
        %s931 = scalar_lea.vmem [#allocation3], %s930
        // Predicated region
        $region49: #{tpu_custom_call.1} parent=47 // pred_check
          %p932 = pneg %p191
        $region50: #{tpu_custom_call.1} parent=47 // pred_check_branch
          %934 = sbr.rel (%p932) target = $region52
        $region51: #{tpu_custom_call.1} parent=47 // pred_region
          %s936 = ssub.s32 128, 128
          %937 = vsyncadd %s928, %s936
          %s938 = smul.addr %s21, 2
          %s939 = smul.addr %s938, 64
          %s940 = scalar_lea.hbm %s7, %s939
          %s942 = sshll.u32 %s931, 4
          %s943 = int_to_ptr.vmem [resolvable:$true] %s942
          %945 = dma.vmem_to_hbm [thread:$0]  %s943, 128, %s940, %s928
        $region52: #{tpu_custom_call.1} parent=47 // pred_fallthru
          _
      $region48: #{tpu_custom_call.1} parent=5 // pred_fallthru
        _
      %p946 = scmp.le.s32.totalorder 2, %s16
      // Predicated region
      $region53: #{tpu_custom_call.1} parent=5 // pred_check
        %p947 = pneg %p946
      $region54: #{tpu_custom_call.1} parent=5 // pred_check_branch
        %949 = sbr.rel (%p947) target = $region56
      $region55: #{tpu_custom_call.1} parent=5 // pred_region
        %s950 = ssub.s32 %s16, 2
        // Predicated region
        $region57: #{tpu_custom_call.1} parent=55 // pred_check
          %p951 = pneg %p197
        $region58: #{tpu_custom_call.1} parent=55 // pred_check_branch
          %953 = sbr.rel (%p951) target = $region60
        $region59: #{tpu_custom_call.1} parent=55 // pred_region
          %s954 = sand.u32 %s182, 1
          %s955 = scalar_lea.sflag [#allocation4], %s954
          %s956 = sand.u32 %s182, 1
          %s957 = smul.addr %s956, 8
          %s958 = scalar_lea.vmem [#allocation3], %s957
          %959 = dma.done %s955, 128
        $region60: #{tpu_custom_call.1} parent=55 // pred_fallthru
          _
      $region56: #{tpu_custom_call.1} parent=5 // pred_fallthru
        _
    $region6: #{tpu_custom_call.1} parent=1 // loop_footer
      %s20 = sadd.s32 1, %s16
    $region7: #{tpu_custom_call.1} parent=1 // loop_footer_branch
      %15 = sbr.rel target = $region3
    $region8: #{tpu_custom_call.1} parent=1 // loop_exit
      _
    %960 = vsyncpa [#allocation4], 1
    %s961 = scalar_lea.sflag [#allocation4], 1
    %962 = vsyncpa %s961, 1

</llo_original>
